<compile_context>
chip_gen: v7x
topology: tpu7x:2x2x1
jax: 0.10.0
libtpu: 0.0.40
codegen_flags: <defaults>
</compile_context>

<pallas_src>
import jax
import jax.numpy as jnp
from jax.experimental import pallas as pl
from jax.experimental.pallas import tpu as pltpu


def _lm_head_kernel(x_ref, w_ref, o_ref, acc_ref):
    """One (tm, tn) output tile, accumulating over the K (hidden) grid axis.

    x_ref: (tm, tk) activation tile
    w_ref: (tn, tk) weight-row tile (rows of the (V, H) lm_head weight)
    o_ref: (tm, tn) logits tile
    acc_ref: (tm, tn) f32 accumulator scratch (persists across the K axis)
    """
    @pl.when(pl.program_id(2) == 0)
    def _():
        acc_ref[...] = jnp.zeros_like(acc_ref)

    # x @ w.T on the MXU: contract the last (H) axis of both tiles.
    acc_ref[...] += jax.lax.dot_general(
        x_ref[...],
        w_ref[...],
        dimension_numbers=(((1,), (1,)), ((), ())),
        preferred_element_type=jnp.float32,
    )

    @pl.when(pl.program_id(2) == pl.num_programs(2) - 1)
    def _():
        o_ref[...] = acc_ref[...].astype(o_ref.dtype)


def _pick_tile(dim, preferred, align):
    """Largest multiple of `align` <= preferred that divides dim, else dim."""
    t = min(preferred, dim)
    t = (t // align) * align
    while t >= align:
        if dim % t == 0:
            return t
        t -= align
    return dim  # full-extent block (always legal)


def moe_head_pp_forward(hidden_states, lm_head_weight, lb_loss):
    """Pallas implementation of MoeHeadPP.forward.

    Args:
      hidden_states: (B, S, H) activations.
      lm_head_weight: (V, H) lm_head weight (PyTorch Linear layout).
      lb_loss: (1,) load-balancing loss, passed through untouched.

    Returns:
      (logits (B, S, V), lb_loss)
    """
    bsz, seq_len, hidden = hidden_states.shape
    vocab, hidden_w = lm_head_weight.shape
    assert hidden == hidden_w, "hidden_size mismatch between activations and lm_head"

    out_dtype = hidden_states.dtype
    m = bsz * seq_len
    x = hidden_states.reshape(m, hidden)

    # Pad the token dim up to a sublane multiple so (tm, tk) blocks are legal.
    m_pad = ((m + 7) // 8) * 8
    if m_pad != m:
        x = jnp.pad(x, ((0, m_pad - m), (0, 0)))

    # Tile selection: lane-dense output (tn mult of 128), big K chunks,
    # sublane-aligned tm. Modest sizes keep double-buffered VMEM usage small
    # enough for v7x's 64 MiB VMEM as well.
    tm = _pick_tile(m_pad, 256, 8)
    tn = _pick_tile(vocab, 512, 128)
    tk = _pick_tile(hidden, 512, 128)

    grid = (m_pad // tm, vocab // tn, hidden // tk)

    dtype_bytes = jnp.dtype(out_dtype).itemsize
    cost = pl.CostEstimate(
        flops=2 * m_pad * vocab * hidden,
        transcendentals=0,
        bytes_accessed=(m_pad * hidden + vocab * hidden) * dtype_bytes
        + m_pad * vocab * dtype_bytes,
    )

    logits_flat = pl.pallas_call(
        _lm_head_kernel,
        out_shape=jax.ShapeDtypeStruct((m_pad, vocab), out_dtype),
        grid_spec=pltpu.PrefetchScalarGridSpec(
            num_scalar_prefetch=0,
            grid=grid,
            in_specs=[
                pl.BlockSpec((tm, tk), lambda i, j, k: (i, k)),  # activations
                pl.BlockSpec((tn, tk), lambda i, j, k: (j, k)),  # weight rows
            ],
            out_specs=pl.BlockSpec((tm, tn), lambda i, j, k: (i, j)),
            scratch_shapes=[pltpu.VMEM((tm, tn), jnp.float32)],
        ),
        compiler_params=pltpu.CompilerParams(
            dimension_semantics=("parallel", "parallel", "arbitrary"),
        ),
        cost_estimate=cost,
    )(x, lm_head_weight)

    logits = logits_flat[:m].reshape(bsz, seq_len, vocab)

    # lb_loss is a pure passthrough in the forward.
    return logits, lb_loss


if __name__ == "__main__":
    # Small synthetic config consistent with the module's __init__:
    HIDDEN_SIZE = 128
    VOCAB_SIZE = 256
    # learnable_cutoff only affects the backward grad hook; no forward effect.
    BSZ, SEQ_LEN = 2, 8

    key = jax.random.PRNGKey(0)
    k_w, k_x = jax.random.split(key)

    lm_head_weight = jax.random.normal(
        k_w, (VOCAB_SIZE, HIDDEN_SIZE), dtype=jnp.float32
    ) * 0.02
    hidden_states = jax.random.normal(
        k_x, (BSZ, SEQ_LEN, HIDDEN_SIZE), dtype=jnp.float32
    )
    lb_loss = jnp.zeros((1,), dtype=jnp.float32)

    logits, lb_loss_out = moe_head_pp_forward(hidden_states, lm_head_weight, lb_loss)
    jax.block_until_ready((logits, lb_loss_out))

    # Reference: plain-JAX x @ W.T (== torch.nn.Linear with bias=False).
    ref = jnp.einsum("bsh,vh->bsv", hidden_states, lm_head_weight)

    assert logits.shape == (BSZ, SEQ_LEN, VOCAB_SIZE)
    assert lb_loss_out.shape == (1,)
    assert jnp.allclose(logits, ref, atol=1e-4, rtol=1e-4)
    assert float(lb_loss_out[0]) == 0.0

    print("KERNEL_OK")
</pallas_src>

<mosaic_0001>
module attributes {stable_mosaic.version = 11 : i64} {
  func.func @_lm_head_kernel(%arg0: i32, %arg1: i32, %arg2: i32, %arg3: memref<16x128xf32, #tpu.memory_space<vmem>>, %arg4: memref<256x128xf32, #tpu.memory_space<vmem>>, %arg5: memref<16x256xf32, #tpu.memory_space<vmem>>, %arg6: memref<16x256xf32, #tpu.memory_space<vmem>>) attributes {dimension_semantics = [#tpu.dimension_semantics<parallel>, #tpu.dimension_semantics<parallel>, #tpu.dimension_semantics<arbitrary>], iteration_bounds = array<i64: 1, 1, 1>, scalar_prefetch = 0 : i64, scratch_operands = 1 : i64, tpu.core_type = #tpu.core_type<tc>, window_params = [{transform_indices = @transform_0, window_bounds = array<i64: 16, 128>}, {transform_indices = @transform_1, window_bounds = array<i64: 256, 128>}, {transform_indices = @transform_2, window_bounds = array<i64: 16, 256>}]} {
    %c0_i32 = arith.constant 0 : i32
    %0 = arith.cmpi eq, %arg2, %c0_i32 : i32
    %1 = arith.extui %0 : i1 to i32
    %c0_i32_0 = arith.constant 0 : i32
    %2 = arith.cmpi ne, %1, %c0_i32_0 : i32
    scf.if %2 {
      %cst_10 = arith.constant 0.000000e+00 : f32
      %12 = vector.broadcast %cst_10 : f32 to vector<16x256xf32>
      %c0_11 = arith.constant 0 : index
      %c0_12 = arith.constant 0 : index
      %13 = vector.load %arg6[%c0_11, %c0_12] : memref<16x256xf32, #tpu.memory_space<vmem>>, vector<16x256xf32>
      tpu.vector_store %arg6[%c0_11, %c0_12], %12 {strides = array<i32>} : memref<16x256xf32, #tpu.memory_space<vmem>>, vector<16x256xf32>,
    } else {
    }
    %c0 = arith.constant 0 : index
    %c0_1 = arith.constant 0 : index
    %3 = vector.load %arg6[%c0, %c0_1] : memref<16x256xf32, #tpu.memory_space<vmem>>, vector<16x256xf32>
    %c0_2 = arith.constant 0 : index
    %c0_3 = arith.constant 0 : index
    %4 = vector.load %arg3[%c0_2, %c0_3] : memref<16x128xf32, #tpu.memory_space<vmem>>, vector<16x128xf32>
    %c0_4 = arith.constant 0 : index
    %c0_5 = arith.constant 0 : index
    %5 = vector.load %arg4[%c0_4, %c0_5] : memref<256x128xf32, #tpu.memory_space<vmem>>, vector<256x128xf32>
    %cst = arith.constant dense<0.000000e+00> : vector<16x256xf32>
    %6 = tpu.matmul %4, %5, %cst {dimension_numbers = #tpu.dot_dimension_numbers<[1], [1], [0], [0], [0, 0, 1, 0], [], []>} : vector<16x128xf32>, vector<256x128xf32>, vector<16x256xf32> -> vector<16x256xf32>
    %7 = arith.addf %3, %6 : vector<16x256xf32>
    %c0_6 = arith.constant 0 : index
    %c0_7 = arith.constant 0 : index
    %8 = vector.load %arg6[%c0_6, %c0_7] : memref<16x256xf32, #tpu.memory_space<vmem>>, vector<16x256xf32>
    tpu.vector_store %arg6[%c0_6, %c0_7], %7 {strides = array<i32>} : memref<16x256xf32, #tpu.memory_space<vmem>>, vector<16x256xf32>,
    %c0_i32_8 = arith.constant 0 : i32
    %9 = arith.cmpi eq, %arg2, %c0_i32_8 : i32
    %10 = arith.extui %9 : i1 to i32
    %c0_i32_9 = arith.constant 0 : i32
    %11 = arith.cmpi ne, %10, %c0_i32_9 : i32
    scf.if %11 {
      %c0_10 = arith.constant 0 : index
      %c0_11 = arith.constant 0 : index
      %12 = vector.load %arg6[%c0_10, %c0_11] : memref<16x256xf32, #tpu.memory_space<vmem>>, vector<16x256xf32>
      %c0_12 = arith.constant 0 : index
      %c0_13 = arith.constant 0 : index
      %13 = vector.load %arg5[%c0_12, %c0_13] : memref<16x256xf32, #tpu.memory_space<vmem>>, vector<16x256xf32>
      tpu.vector_store %arg5[%c0_12, %c0_13], %12 {strides = array<i32>} : memref<16x256xf32, #tpu.memory_space<vmem>>, vector<16x256xf32>,
    } else {
    }
    return
  }
  func.func @transform_0(%arg0: i32, %arg1: i32, %arg2: i32) -> (i32, i32) {
    %c0_i32 = arith.constant 0 : i32
    return %arg0, %arg2 : i32, i32
  }
  func.func @transform_1(%arg0: i32, %arg1: i32, %arg2: i32) -> (i32, i32) {
    %c0_i32 = arith.constant 0 : i32
    return %arg1, %arg2 : i32, i32
  }
  func.func @transform_2(%arg0: i32, %arg1: i32, %arg2: i32) -> (i32, i32) {
    %c0_i32 = arith.constant 0 : i32
    return %arg0, %arg1 : i32, i32
  }
}

</mosaic_0001>

<llo_original>
// kernel: tpu_custom_call.1
$region0: #{tpu_custom_call.1}
  #allocation0 [shape = 'u32[]', space=smem, size = 0x4, offset = 0x4, fixed_abs, tag = 'smem constant byte address 0x4 - core index']
  #allocation1 [shape = 'u32[144,128]{1,0:T(1,128)}', space=vmem, size = 0x12000, scoped, tag = 'internal scratch']
  #allocation2 [shape = 'f32[16,256]{1,0:T(8,128)}', space=vmem, size = 0x4000, scoped, tag = 'scratch operand']
  %s0 = inlined_call_operand.hbm [shape: f32[16,128], index: 0, kind: input, shape index: {}]
  %s1 = inlined_call_operand.hbm [shape: f32[256,128], index: 1, kind: input, shape index: {}]
  %s2 = inlined_call_operand.hbm [shape: f32[16,256], index: 2, kind: output, shape index: {}]
  %s3 = sld [smem:[#allocation0]]
  $region34: #{tpu_custom_call.1} parent=0
    _
  %s5 = ssub.s32 1, %s3
  %s6 = scalar_select 0, %s5, %s3
  $region1: #{tpu_custom_call.1} parent=0
    #allocation3 [shape = 'u8[8192]{0}', space=vmem, size = 0x2000, scoped, tag = 'input window, operand 0, single buffered']
    #allocation4 [shape = 's32[1]{0}', space=sflag, size = 0x4, scoped, tag = 'scoped memory for tpu_custom_call.1']
    #allocation5 [shape = 's32[1]{0}', space=sflag, size = 0x4, scoped, tag = 'scoped memory for tpu_custom_call.1']
    #allocation6 [shape = 'u8[131072]{0}', space=vmem, size = 0x20000, scoped, tag = 'input window, operand 1, single buffered']
    #allocation7 [shape = 's32[1]{0}', space=sflag, size = 0x4, scoped, tag = 'scoped memory for tpu_custom_call.1']
    #allocation8 [shape = 'u8[16384]{0}', space=vmem, size = 0x4000, scoped, tag = 'output window, operand 0, single buffered']
    %7 = vsyncpa [#allocation4], 0
    %8 = vsyncpa [#allocation7], 0
    %9 = vsyncpa [#allocation5], 0
    // Predicated region
    $region2: #{tpu_custom_call.1} parent=1 // pred_check
      _
    $region3: #{tpu_custom_call.1} parent=1 // pred_check_branch
      %11 = sbr.rel (0) target = $region5
    $region4: #{tpu_custom_call.1} parent=1 // pred_region
      %s13 = ssub.s32 256, 256
      %14 = vsyncadd [#allocation4], %s13
      %s15 = sshll.u32 [#allocation3], 4
      %s16 = int_to_ptr.vmem [resolvable:$true] %s15
      %21 = dma.hbm_to_vmem [thread:$0]  %s0, 256, %s16, [#allocation4], 128, 128, 8
    $region5: #{tpu_custom_call.1} parent=1 // pred_fallthru
      _
    // Predicated region
    $region6: #{tpu_custom_call.1} parent=1 // pred_check
      _
    $region7: #{tpu_custom_call.1} parent=1 // pred_check_branch
      %23 = sbr.rel (0) target = $region9
    $region8: #{tpu_custom_call.1} parent=1 // pred_region
      %s25 = ssub.s32 4096, 4096
      %26 = vsyncadd [#allocation7], %s25
      %s27 = sshll.u32 [#allocation6], 4
      %s28 = int_to_ptr.vmem [resolvable:$true] %s27
      %33 = dma.hbm_to_vmem [thread:$0]  %s1, 4096, %s28, [#allocation7], 128, 128, 8
    $region9: #{tpu_custom_call.1} parent=1 // pred_fallthru
      _
    // Predicated region
    $region10: #{tpu_custom_call.1} parent=1 // pred_check
      _
    $region11: #{tpu_custom_call.1} parent=1 // pred_check_branch
      %35 = sbr.rel (0) target = $region13
    $region12: #{tpu_custom_call.1} parent=1 // pred_region
      %36 = dma.done [#allocation4], 256
    $region13: #{tpu_custom_call.1} parent=1 // pred_fallthru
      _
    // Predicated region
    $region14: #{tpu_custom_call.1} parent=1 // pred_check
      _
    $region15: #{tpu_custom_call.1} parent=1 // pred_check_branch
      %38 = sbr.rel (0) target = $region17
    $region16: #{tpu_custom_call.1} parent=1 // pred_region
      %39 = dma.done [#allocation7], 4096
    $region17: #{tpu_custom_call.1} parent=1 // pred_fallthru
      _
    %p40 = scmp.eq.s32.totalorder 0, 0
    // Predicated region
    $region18: #{tpu_custom_call.1} parent=1 // pred_check
      %p41 = pneg %p40
    $region19: #{tpu_custom_call.1} parent=1 // pred_check_branch
      %43 = sbr.rel (%p41) target = $region21
    $region20: #{tpu_custom_call.1} parent=1 // pred_region
      %44 = vst [vmem:[#allocation2] sm:$0xff] 0.0
      %45 = vst [vmem:[#allocation2 + $0x8] sm:$0xff] 0.0
      %46 = vst [vmem:[#allocation2 + $0x10] sm:$0xff] 0.0
      %47 = vst [vmem:[#allocation2 + $0x18] sm:$0xff] 0.0
    $region21: #{tpu_custom_call.1} parent=1 // pred_fallthru
      _
    %v48 = vld [vmem:[#allocation2] sm:$0xff]
    %v49 = vld [vmem:[#allocation2 + $0x8] sm:$0xff]
    %v50 = vld [vmem:[#allocation2 + $0x10] sm:$0xff]
    %v51 = vld [vmem:[#allocation2 + $0x18] sm:$0xff]
    %v52 = vld [vmem:[#allocation3] sm:$0xff]
    %v53 = vld [vmem:[#allocation3 + $0x8] sm:$0xff]
    %v54 = vld [vmem:[#allocation6] sm:$0xff]
    %v55 = vld [vmem:[#allocation6 + $0x8] sm:$0xff]
    %v56 = vld [vmem:[#allocation6 + $0x10] sm:$0xff]
    %v57 = vld [vmem:[#allocation6 + $0x18] sm:$0xff]
    %v58 = vld [vmem:[#allocation6 + $0x20] sm:$0xff]
    %v59 = vld [vmem:[#allocation6 + $0x28] sm:$0xff]
    %v60 = vld [vmem:[#allocation6 + $0x30] sm:$0xff]
    %v61 = vld [vmem:[#allocation6 + $0x38] sm:$0xff]
    %v62 = vld [vmem:[#allocation6 + $0x40] sm:$0xff]
    %v63 = vld [vmem:[#allocation6 + $0x48] sm:$0xff]
    %v64 = vld [vmem:[#allocation6 + $0x50] sm:$0xff]
    %v65 = vld [vmem:[#allocation6 + $0x58] sm:$0xff]
    %v66 = vld [vmem:[#allocation6 + $0x60] sm:$0xff]
    %v67 = vld [vmem:[#allocation6 + $0x68] sm:$0xff]
    %v68 = vld [vmem:[#allocation6 + $0x70] sm:$0xff]
    %v69 = vld [vmem:[#allocation6 + $0x78] sm:$0xff]
    %v70 = vld [vmem:[#allocation6 + $0x80] sm:$0xff]
    %v71 = vld [vmem:[#allocation6 + $0x88] sm:$0xff]
    %v72 = vld [vmem:[#allocation6 + $0x90] sm:$0xff]
    %v73 = vld [vmem:[#allocation6 + $0x98] sm:$0xff]
    %v74 = vld [vmem:[#allocation6 + $0xa0] sm:$0xff]
    %v75 = vld [vmem:[#allocation6 + $0xa8] sm:$0xff]
    %v76 = vld [vmem:[#allocation6 + $0xb0] sm:$0xff]
    %v77 = vld [vmem:[#allocation6 + $0xb8] sm:$0xff]
    %v78 = vld [vmem:[#allocation6 + $0xc0] sm:$0xff]
    %v79 = vld [vmem:[#allocation6 + $0xc8] sm:$0xff]
    %v80 = vld [vmem:[#allocation6 + $0xd0] sm:$0xff]
    %v81 = vld [vmem:[#allocation6 + $0xd8] sm:$0xff]
    %v82 = vld [vmem:[#allocation6 + $0xe0] sm:$0xff]
    %v83 = vld [vmem:[#allocation6 + $0xe8] sm:$0xff]
    %v84 = vld [vmem:[#allocation6 + $0xf0] sm:$0xff]
    %v85 = vld [vmem:[#allocation6 + $0xf8] sm:$0xff]
    %86 = vmatprep.subr.mxu0 0.0
    %87 = vmatpush1.xpose.msra.mxu0 %v54
    %88 = vmatprep.subr.mxu0 0.0
    %89 = vmatpush1.xpose.msra.mxu0 %v55
    %90 = vmatprep.subr.mxu0 0.0
    %91 = vmatpush1.xpose.msra.mxu0 %v56
    %92 = vmatprep.subr.mxu0 0.0
    %93 = vmatpush1.xpose.msra.mxu0 %v57
    %94 = vmatprep.subr.mxu0 0.0
    %95 = vmatpush1.xpose.msra.mxu0 %v58
    %96 = vmatprep.subr.mxu0 0.0
    %97 = vmatpush1.xpose.msra.mxu0 %v59
    %98 = vmatprep.subr.mxu0 0.0
    %99 = vmatpush1.xpose.msra.mxu0 %v60
    %100 = vmatprep.subr.mxu0 0.0
    %101 = vmatpush1.xpose.msra.mxu0 %v61
    %102 = vmatprep.subr.mxu0 0.0
    %103 = vmatpush1.xpose.msra.mxu0 %v62
    %104 = vmatprep.subr.mxu0 0.0
    %105 = vmatpush1.xpose.msra.mxu0 %v63
    %106 = vmatprep.subr.mxu0 0.0
    %107 = vmatpush1.xpose.msra.mxu0 %v64
    %108 = vmatprep.subr.mxu0 0.0
    %109 = vmatpush1.xpose.msra.mxu0 %v65
    %110 = vmatprep.subr.mxu0 0.0
    %111 = vmatpush1.xpose.msra.mxu0 %v66
    %112 = vmatprep.subr.mxu0 0.0
    %113 = vmatpush1.xpose.msra.mxu0 %v67
    %114 = vmatprep.subr.mxu0 0.0
    %115 = vmatpush1.xpose.msra.mxu0 %v68
    %116 = vmatprep.subr.mxu0 0.0
    %117 = vmatpush1.xpose.msra.mxu0 %v69
    %118 = vmatprep.subr.mxu0 0.0
    %119 = vmatpush1.xpose.msra.mxu0 %v70
    %120 = vmatprep.subr.mxu0 0.0
    %121 = vmatpush1.xpose.msra.mxu0 %v71
    %122 = vmatprep.subr.mxu0 0.0
    %123 = vmatpush1.xpose.msra.mxu0 %v72
    %124 = vmatprep.subr.mxu0 0.0
    %125 = vmatpush1.xpose.msra.mxu0 %v73
    %126 = vmatprep.subr.mxu0 0.0
    %127 = vmatpush1.xpose.msra.mxu0 %v74
    %128 = vmatprep.subr.mxu0 0.0
    %129 = vmatpush1.xpose.msra.mxu0 %v75
    %130 = vmatprep.subr.mxu0 0.0
    %131 = vmatpush1.xpose.msra.mxu0 %v76
    %132 = vmatprep.subr.mxu0 0.0
    %133 = vmatpush1.xpose.msra.mxu0 %v77
    %134 = vmatprep.subr.mxu0 0.0
    %135 = vmatpush1.xpose.msra.mxu0 %v78
    %136 = vmatprep.subr.mxu0 0.0
    %137 = vmatpush1.xpose.msra.mxu0 %v79
    %138 = vmatprep.subr.mxu0 0.0
    %139 = vmatpush1.xpose.msra.mxu0 %v80
    %140 = vmatprep.subr.mxu0 0.0
    %141 = vmatpush1.xpose.msra.mxu0 %v81
    %142 = vmatprep.subr.mxu0 0.0
    %143 = vmatpush1.xpose.msra.mxu0 %v82
    %144 = vmatprep.subr.mxu0 0.0
    %145 = vmatpush1.xpose.msra.mxu0 %v83
    %146 = vmatprep.subr.mxu0 0.0
    %147 = vmatpush1.xpose.msra.mxu0 %v84
    %148 = vmatprep.subr.mxu0 0.0
    %149 = vmatpush1.xpose.msra.mxu0 %v85
    %150 = vmatprep.mubr.f32.mxu0 0.0
    %151 = vmatmul.mubr.f32.gmra.mrb[0].mxu0 %v52
    %v152 = vpop.f32.mrb[0].mxu0
    %v153 = vadd.f32 0.0, %v152
    %v154 = vpop.f32.mrb[0].mxu0
    %v155 = vadd.f32 0.0, %v154
    %156 = vmatprep.mubr.f32.mxu0 0.0
    %157 = vmatmul.mubr.f32.gmra.mrb[0].mxu0 %v53
    %v158 = vpop.f32.mrb[0].mxu0
    %v159 = vadd.f32 0.0, %v158
    %v160 = vpop.f32.mrb[0].mxu0
    %v161 = vadd.f32 0.0, %v160
    %162 = vdwg.mxu0
    %v163 = vadd.f32 %v48, %v153
    %v164 = vadd.f32 %v49, %v155
    %v165 = vadd.f32 %v50, %v159
    %v166 = vadd.f32 %v51, %v161
    %167 = vst [vmem:[#allocation2] sm:$0xff] %v163
    %168 = vst [vmem:[#allocation2 + $0x8] sm:$0xff] %v164
    %169 = vst [vmem:[#allocation2 + $0x10] sm:$0xff] %v165
    %170 = vst [vmem:[#allocation2 + $0x18] sm:$0xff] %v166
    // Predicated region
    $region22: #{tpu_custom_call.1} parent=1 // pred_check
      %p171 = pneg %p40
    $region23: #{tpu_custom_call.1} parent=1 // pred_check_branch
      %173 = sbr.rel (%p171) target = $region25
    $region24: #{tpu_custom_call.1} parent=1 // pred_region
      %v174 = vld [vmem:[#allocation2] sm:$0xff]
      %v175 = vld [vmem:[#allocation2 + $0x8] sm:$0xff]
      %v176 = vld [vmem:[#allocation2 + $0x10] sm:$0xff]
      %v177 = vld [vmem:[#allocation2 + $0x18] sm:$0xff]
      %178 = vst [vmem:[#allocation8] sm:$0xff] %v174
      %179 = vst [vmem:[#allocation8 + $0x8] sm:$0xff] %v175
      %180 = vst [vmem:[#allocation8 + $0x10] sm:$0xff] %v176
      %181 = vst [vmem:[#allocation8 + $0x18] sm:$0xff] %v177
    $region25: #{tpu_custom_call.1} parent=1 // pred_fallthru
      _
    // Predicated region
    $region26: #{tpu_custom_call.1} parent=1 // pred_check
      _
    $region27: #{tpu_custom_call.1} parent=1 // pred_check_branch
      %183 = sbr.rel (0) target = $region29
    $region28: #{tpu_custom_call.1} parent=1 // pred_region
      %s185 = ssub.s32 512, 512
      %186 = vsyncadd [#allocation5], %s185
      %s187 = sshll.u32 [#allocation8], 4
      %s188 = int_to_ptr.vmem [resolvable:$true] %s187
      %193 = dma.vmem_to_hbm [thread:$0]  %s188, 512, %s2, [#allocation5], 256, 256, 16
    $region29: #{tpu_custom_call.1} parent=1 // pred_fallthru
      _
    // Predicated region
    $region30: #{tpu_custom_call.1} parent=1 // pred_check
      _
    $region31: #{tpu_custom_call.1} parent=1 // pred_check_branch
      %195 = sbr.rel (0) target = $region33
    $region32: #{tpu_custom_call.1} parent=1 // pred_region
      %196 = dma.done [#allocation5], 512
    $region33: #{tpu_custom_call.1} parent=1 // pred_fallthru
      _
    %197 = vsyncpa [#allocation4], 1
    %198 = vsyncpa [#allocation7], 1
    %199 = vsyncpa [#allocation5], 1

</llo_original>
